<compile_context>
chip_gen: v7x
topology: tpu7x:2x2x1
jax: 0.10.0
libtpu: 0.0.40
codegen_flags: <defaults>
</compile_context>

<pallas_src>
import functools

import jax
import jax.numpy as jnp
from jax.experimental import pallas as pl
from jax.experimental.pallas import tpu as pltpu


def _sigmoid_kernel(x_ref, o_ref):
    # Compute in f32 (safe on v5e, which has no bf16 VPU/EUP).  One EUP
    # transcendental per element via sigmoid(x) = 0.5*tanh(0.5*x) + 0.5,
    # with the mul/fma on the VPU; exact (no approx reciprocal).
    x = x_ref[...].astype(jnp.float32)
    o_ref[...] = (0.5 * jnp.tanh(0.5 * x) + 0.5).astype(o_ref.dtype)


# Widest lane-dense last dim that divides the flat size (free, pad-free reshape).
_LANE_CANDIDATES = (4096, 2048, 1024, 512, 256, 128)

# Below this total size a single full-extent block is fine (per-step overhead
# would dominate any pipelining win).
_SMALL_BYTES = 512 * 1024

# Keep at least this many grid steps for non-tiny inputs: restores in/out DMA
# overlap and gives >= 2 steps per TensorCore for v7x megacore sharding.
_MIN_GRID_STEPS = 4


@functools.lru_cache(maxsize=None)
def _block_config():
    """Returns (target_block_bytes, vmem_limit_bytes or None) per TPU generation."""
    try:
        kind = jax.devices()[0].device_kind.lower()
    except Exception:
        kind = ""
    if "7" in kind:
        # v7x: ~3.2 TB/s HBM, 64 MiB VMEM (32 MiB scoped default).
        # 4 MiB blocks * 2 buffers * (in + out) = 16 MiB working set.
        return 4 * 1024 * 1024, None
    if "v6" in kind or "6e" in kind:
        # v6e: ~1.4 TB/s, 128 MiB VMEM (32 MiB scoped default).
        # 6 MiB blocks -> 24 MiB working set; raise the scoped limit for headroom.
        return 6 * 1024 * 1024, 48 << 20
    # v5e (and unknown chips): 16 MiB default scoped VMEM -> stay at 2 MiB
    # (8 MiB double-buffered working set, already near the 0.82 TB/s roofline).
    return 2 * 1024 * 1024, None


def _launch(x2d: jax.Array) -> jax.Array:
    rows, lanes = x2d.shape
    itemsize = jnp.dtype(x2d.dtype).itemsize
    total_bytes = rows * lanes * itemsize
    target_block_bytes, vmem_limit = _block_config()

    # Native sublane tile for the dtype (8 rows f32 / 16 bf16 / 32 int8).
    sub = max(8, 32 // itemsize)

    if total_bytes <= _SMALL_BYTES or rows <= sub:
        block_rows = rows  # single full-extent block (tiny input)
    else:
        block_rows = max(1, target_block_bytes // (lanes * itemsize))
        # Cap the block so the grid keeps >= _MIN_GRID_STEPS steps
        # (pipelining + megacore sharding for medium inputs).
        block_rows = min(block_rows, pl.cdiv(rows, _MIN_GRID_STEPS))
        block_rows = max(sub, (block_rows // sub) * sub)
        if block_rows >= rows:
            block_rows = rows

    grid = (pl.cdiv(rows, block_rows),)  # partial tail block is fine (elementwise)

    cp = dict(dimension_semantics=("parallel",))
    if vmem_limit is not None:
        cp["vmem_limit_bytes"] = vmem_limit

    return pl.pallas_call(
        _sigmoid_kernel,
        out_shape=jax.ShapeDtypeStruct((rows, lanes), x2d.dtype),
        grid=grid,
        in_specs=[pl.BlockSpec((block_rows, lanes), lambda i: (i, 0))],
        out_specs=pl.BlockSpec((block_rows, lanes), lambda i: (i, 0)),
        compiler_params=pltpu.CompilerParams(**cp),
    )(x2d)


def sigmoid_pallas(x: jax.Array) -> jax.Array:
    """Elementwise sigmoid via a Pallas TPU kernel (forward of SigmoidCppM).

    I/O stays in the input dtype; compute is f32 inside the kernel.
    """
    orig_shape = x.shape
    n = x.size
    if n == 0:
        return x

    # Fast path: free (metadata-only) reshape to a lane-dense 2D slab.
    for lanes in _LANE_CANDIDATES:
        if n % lanes == 0:
            out2d = _launch(x.reshape(n // lanes, lanes))
            return out2d.reshape(orig_shape)

    # Ragged path: kernel on the 128-aligned prefix; only the <128-element
    # tail is handled separately (no full-array pad + slice round-trips).
    # TODO(synk): a fully copy-free ragged path would need a manual-DMA
    # (memory_space=pl.ANY) kernel; not worth it for an elementwise op.
    lanes = 128
    x_flat = x.reshape(-1)
    n_main = (n // lanes) * lanes
    parts = []
    if n_main:
        main2d = x_flat[:n_main].reshape(n_main // lanes, lanes)
        parts.append(_launch(main2d).reshape(-1))
    parts.append(jax.nn.sigmoid(x_flat[n_main:]))
    out = jnp.concatenate(parts) if len(parts) > 1 else parts[0]
    return out.reshape(orig_shape)


if __name__ == "__main__":
    key = jax.random.PRNGKey(0)

    # Main check: NCHW f32 input (matches the module's typical usage).
    x = jax.random.normal(key, (2, 4, 16, 16), dtype=jnp.float32)
    y = sigmoid_pallas(x)
    jax.block_until_ready(y)
    assert y.shape == x.shape and y.dtype == x.dtype
    assert jnp.max(jnp.abs(y - jax.nn.sigmoid(x))) < 1e-5

    # Medium input: exercises the multi-step, pipelined grid (>= 4 steps).
    xm = jax.random.normal(jax.random.PRNGKey(1), (256, 1024), dtype=jnp.float32)
    ym = sigmoid_pallas(xm)
    jax.block_until_ready(ym)
    assert jnp.max(jnp.abs(ym - jax.nn.sigmoid(xm))) < 1e-5

    # Ragged size exercising both the prefix kernel and the tail (650 = 5*128 + 10).
    xr = jax.random.normal(jax.random.PRNGKey(2), (5, 130), dtype=jnp.float32)
    yr = sigmoid_pallas(xr)
    jax.block_until_ready(yr)
    assert yr.shape == xr.shape and yr.dtype == xr.dtype
    assert jnp.max(jnp.abs(yr - jax.nn.sigmoid(xr))) < 1e-5

    # Tiny ragged size entirely below one lane width (105 elements).
    xt = jax.random.normal(jax.random.PRNGKey(3), (3, 5, 7), dtype=jnp.float32)
    yt = sigmoid_pallas(xt)
    jax.block_until_ready(yt)
    assert yt.shape == xt.shape and yt.dtype == xt.dtype
    assert jnp.max(jnp.abs(yt - jax.nn.sigmoid(xt))) < 1e-5

    # bf16 path: I/O stays bf16 end-to-end; f32 compute inside the kernel.
    xb = jax.random.normal(jax.random.PRNGKey(4), (2, 4, 16, 16)).astype(jnp.bfloat16)
    yb = sigmoid_pallas(xb)
    jax.block_until_ready(yb)
    assert yb.dtype == jnp.bfloat16 and yb.shape == xb.shape
    assert jnp.max(jnp.abs(yb.astype(jnp.float32)
                           - jax.nn.sigmoid(xb.astype(jnp.float32)))) < 1e-2

    print("KERNEL_OK")
</pallas_src>

<mosaic_0001>
module attributes {stable_mosaic.version = 11 : i64} {
  func.func @_sigmoid_kernel(%arg0: i32, %arg1: memref<1x2048xf32, #tpu.memory_space<vmem>>, %arg2: memref<1x2048xf32, #tpu.memory_space<vmem>>) attributes {dimension_semantics = [#tpu.dimension_semantics<parallel>], iteration_bounds = array<i64: 1>, scalar_prefetch = 0 : i64, scratch_operands = 0 : i64, tpu.core_type = #tpu.core_type<tc>, window_params = [{transform_indices = @transform_0, window_bounds = array<i64: 1, 2048>}, {transform_indices = @transform_1, window_bounds = array<i64: 1, 2048>}]} {
    %c0 = arith.constant 0 : index
    %c0_0 = arith.constant 0 : index
    %0 = vector.load %arg1[%c0, %c0_0] : memref<1x2048xf32, #tpu.memory_space<vmem>>, vector<1x2048xf32>
    %cst = arith.constant 5.000000e-01 : f32
    %1 = vector.broadcast %cst : f32 to vector<1x2048xf32>
    %2 = arith.mulf %1, %0 : vector<1x2048xf32>
    %3 = math.tanh %2 : vector<1x2048xf32>
    %cst_1 = arith.constant 5.000000e-01 : f32
    %4 = vector.broadcast %cst_1 : f32 to vector<1x2048xf32>
    %5 = arith.mulf %4, %3 : vector<1x2048xf32>
    %cst_2 = arith.constant 5.000000e-01 : f32
    %6 = vector.broadcast %cst_2 : f32 to vector<1x2048xf32>
    %7 = arith.addf %5, %6 : vector<1x2048xf32>
    %c0_3 = arith.constant 0 : index
    %c0_4 = arith.constant 0 : index
    %8 = vector.load %arg2[%c0_3, %c0_4] : memref<1x2048xf32, #tpu.memory_space<vmem>>, vector<1x2048xf32>
    tpu.vector_store %arg2[%c0_3, %c0_4], %7 {strides = array<i32>} : memref<1x2048xf32, #tpu.memory_space<vmem>>, vector<1x2048xf32>,
    return
  }
  func.func @transform_0(%arg0: i32) -> (i32, i32) {
    %c0_i32 = arith.constant 0 : i32
    %c0_i32_0 = arith.constant 0 : i32
    return %arg0, %c0_i32 : i32, i32
  }
  func.func @transform_1(%arg0: i32) -> (i32, i32) {
    %c0_i32 = arith.constant 0 : i32
    %c0_i32_0 = arith.constant 0 : i32
    return %arg0, %c0_i32 : i32, i32
  }
}

</mosaic_0001>

<llo_original>
// kernel: tpu_custom_call.1
$region0: #{tpu_custom_call.1}
  #allocation0 [shape = 'u32[]', space=smem, size = 0x4, offset = 0x4, fixed_abs, tag = 'smem constant byte address 0x4 - core index']
  #allocation1 [shape = 'u32[144,128]{1,0:T(1,128)}', space=vmem, size = 0x12000, scoped, tag = 'internal scratch']
  %s0 = inlined_call_operand.hbm [shape: f32[1,2048], index: 0, kind: input, shape index: {}]
  %s1 = inlined_call_operand.hbm [shape: f32[1,2048], index: 1, kind: output, shape index: {}]
  %s2 = sld [smem:[#allocation0]]
  $region18: #{tpu_custom_call.1} parent=0
    _
  %s4 = ssub.s32 1, %s2
  %s5 = scalar_select 0, %s4, %s2
  $region1: #{tpu_custom_call.1} parent=0
    #allocation2 [shape = 'u8[8192]{0}', space=vmem, size = 0x2000, scoped, tag = 'input window, operand 0, single buffered']
    #allocation3 [shape = 's32[1]{0}', space=sflag, size = 0x4, scoped, tag = 'scoped memory for tpu_custom_call.1']
    #allocation4 [shape = 's32[1]{0}', space=sflag, size = 0x4, scoped, tag = 'scoped memory for tpu_custom_call.1']
    #allocation5 [shape = 'u8[8192]{0}', space=vmem, size = 0x2000, scoped, tag = 'output window, operand 0, single buffered']
    %6 = vsyncpa [#allocation3], 0
    %7 = vsyncpa [#allocation4], 0
    // Predicated region
    $region2: #{tpu_custom_call.1} parent=1 // pred_check
      _
    $region3: #{tpu_custom_call.1} parent=1 // pred_check_branch
      %9 = sbr.rel (0) target = $region5
    $region4: #{tpu_custom_call.1} parent=1 // pred_region
      %s11 = ssub.s32 256, 256
      %12 = vsyncadd [#allocation3], %s11
      %s14 = sshll.u32 [#allocation2], 4
      %s15 = int_to_ptr.vmem [resolvable:$true] %s14
      %17 = dma.hbm_to_vmem [thread:$0]  %s0, 256, %s15, [#allocation3]
    $region5: #{tpu_custom_call.1} parent=1 // pred_fallthru
      _
    // Predicated region
    $region6: #{tpu_custom_call.1} parent=1 // pred_check
      _
    $region7: #{tpu_custom_call.1} parent=1 // pred_check_branch
      %19 = sbr.rel (0) target = $region9
    $region8: #{tpu_custom_call.1} parent=1 // pred_region
      %20 = dma.done [#allocation3], 256
    $region9: #{tpu_custom_call.1} parent=1 // pred_fallthru
      _
    %v21 = vld [vmem:[#allocation2] sm:$0xff]
    %v22 = vld [vmem:[#allocation2 + $0x8] sm:$0xff]
    %v23 = vmul.f32 %v21, 0.5
    %v24 = vmul.f32 %v22, 0.5
    %v25 = vtanh.pop %v23
    %v26 = vtanh.pop %v24
    %v27 = vmul.f32 %v25, 0.5
    %v28 = vmul.f32 %v26, 0.5
    %v29 = vadd.f32 %v27, 0.5
    %v30 = vadd.f32 %v28, 0.5
    %31 = vst [vmem:[#allocation5] sm:$0xff] %v29
    %32 = vst [vmem:[#allocation5 + $0x8] sm:$0xff] %v30
    // Predicated region
    $region10: #{tpu_custom_call.1} parent=1 // pred_check
      _
    $region11: #{tpu_custom_call.1} parent=1 // pred_check_branch
      %34 = sbr.rel (0) target = $region13
    $region12: #{tpu_custom_call.1} parent=1 // pred_region
      %s36 = ssub.s32 256, 256
      %37 = vsyncadd [#allocation4], %s36
      %s39 = sshll.u32 [#allocation5], 4
      %s40 = int_to_ptr.vmem [resolvable:$true] %s39
      %42 = dma.vmem_to_hbm [thread:$0]  %s40, 256, %s1, [#allocation4]
    $region13: #{tpu_custom_call.1} parent=1 // pred_fallthru
      _
    // Predicated region
    $region14: #{tpu_custom_call.1} parent=1 // pred_check
      _
    $region15: #{tpu_custom_call.1} parent=1 // pred_check_branch
      %44 = sbr.rel (0) target = $region17
    $region16: #{tpu_custom_call.1} parent=1 // pred_region
      %45 = dma.done [#allocation4], 256
    $region17: #{tpu_custom_call.1} parent=1 // pred_fallthru
      _
    %46 = vsyncpa [#allocation3], 1
    %47 = vsyncpa [#allocation4], 1

</llo_original>
